<compile_context>
chip_gen: v6e
topology: v6e:2x2x1
jax: 0.10.0
libtpu: 0.0.40
codegen_flags: <defaults>
</compile_context>

<pallas_src>
import jax
import jax.numpy as jnp
from jax.experimental import pallas as pl
from jax.experimental.pallas import tpu as pltpu


def _round_up(x, m):
    return (x + m - 1) // m * m


def _conv_bn_kernel(patches_ref, w_ref, shift_ref, out_ref):
    # patches_ref: [TILE_M, K]  (native dtype)
    # w_ref:       [K, TILE_N]  (native dtype, BN scale already folded in)
    # shift_ref:   [1, TILE_N]  (f32)
    # out_ref:     [TILE_M, TILE_N]
    acc = jnp.dot(patches_ref[...], w_ref[...], preferred_element_type=jnp.float32)
    out_ref[...] = (acc + shift_ref[...]).astype(out_ref.dtype)


def patch_merging_forward(x, weight, gamma, beta, running_mean, running_var,
                          eps=1e-5, patch_size=2):
    """x: [B, C, H, W] (NCHW, PyTorch layout). weight: [2C, C, p, p]. Returns [B, 2C, H//p, W//p]."""
    B, C, H, W = x.shape
    ph = pw = patch_size
    assert H % ph == 0 and W % pw == 0, "PatchMerging requires H, W divisible by patch_size"
    Co = weight.shape[0]
    Ho, Wo = H // ph, W // pw
    in_dtype = x.dtype

    # --- wrapper glue: im2col (one relayout of x; required because the boundary is NCHW) ---
    # patches[m, c*ph*pw + i*pw + j] = x[b, c, p*oh + i, p*ow + j]
    # TODO(synk): if the surrounding model keeps activations in NHWC, fuse this 2x2/stride-2
    # gather into the BlockSpec index_map instead of materializing patches in HBM.
    patches = x.reshape(B, C, Ho, ph, Wo, pw)
    patches = patches.transpose(0, 2, 4, 1, 3, 5).reshape(B * Ho * Wo, C * ph * pw)

    M, K = patches.shape
    N = Co

    # --- wrapper glue: fold BN (eval) into the weights; epilogue is only "+ shift" ---
    inv_std = 1.0 / jnp.sqrt(running_var.astype(jnp.float32) + eps)
    scale = gamma.astype(jnp.float32) * inv_std                      # [N]
    shift = beta.astype(jnp.float32) - running_mean.astype(jnp.float32) * scale
    w_mat = weight.reshape(Co, K).T.astype(jnp.float32) * scale[None, :]   # [K, N], f32 fold

    # --- tiling: lane-dense N pad (multiple of 128; 256 tiles when possible for v6e/v7x MXU) ---
    N_pad = _round_up(max(N, 128), 128)
    TILE_N = 256 if N_pad % 256 == 0 else 128

    # M tile: big rows for DMA/compute overlap, sized against a conservative VMEM budget.
    TILE_M = 512 if M >= 512 else _round_up(M, 8)
    itemsize = jnp.dtype(in_dtype).itemsize

    def _vmem_bytes(tm):
        # double-buffered inputs/outputs per grid step
        return 2 * (tm * K * itemsize + K * TILE_N * itemsize
                    + TILE_N * 4 + tm * TILE_N * itemsize)

    VMEM_BUDGET = 24 * 1024 * 1024  # stays under 32 MiB default scoped limit (v7x-safe)
    while _vmem_bytes(TILE_M) > VMEM_BUDGET and TILE_M > 64:
        TILE_M = max(64, _round_up(TILE_M // 2, 8))

    M_pad = _round_up(M, TILE_M)

    # --- pad operands (zero rows/cols contribute nothing; sliced off below) ---
    if M_pad != M:
        patches = jnp.pad(patches, ((0, M_pad - M), (0, 0)))
    w_p = jnp.pad(w_mat, ((0, 0), (0, N_pad - N))).astype(in_dtype)        # [K, N_pad]
    shift_p = jnp.pad(shift[None, :], ((0, 0), (0, N_pad - N)))            # [1, N_pad], f32

    grid = (M_pad // TILE_M, N_pad // TILE_N)

    out_flat = pl.pallas_call(
        _conv_bn_kernel,
        out_shape=jax.ShapeDtypeStruct((M_pad, N_pad), in_dtype),
        grid_spec=pltpu.PrefetchScalarGridSpec(
            num_scalar_prefetch=0,
            grid=grid,
            in_specs=[
                pl.BlockSpec((TILE_M, K), lambda i, j: (i, 0)),      # patches tile
                pl.BlockSpec((K, TILE_N), lambda i, j: (0, j)),      # folded weights
                pl.BlockSpec((1, TILE_N), lambda i, j: (0, j)),      # BN shift
            ],
            out_specs=pl.BlockSpec((TILE_M, TILE_N), lambda i, j: (i, j)),
        ),
        compiler_params=pltpu.CompilerParams(
            dimension_semantics=("parallel", "parallel")),
    )(patches, w_p, shift_p)

    # --- wrapper glue: drop padding, restore NCHW to match the PyTorch module's contract ---
    # TODO(synk): consumers that accept NHWC can take out_flat[:M, :N].reshape(B, Ho, Wo, Co)
    # directly and skip this extra HBM round trip (NHWC is the kernel's lane-dense layout).
    out = out_flat[:M, :N].reshape(B, Ho, Wo, Co).transpose(0, 3, 1, 2)
    return out


def reference_forward(x, weight, gamma, beta, running_mean, running_var,
                      eps=1e-5, patch_size=2):
    # Same inference-time BN folding (exact): BN(conv(x, W)) == conv(x, W*scale) + shift.
    inv_std = 1.0 / jnp.sqrt(running_var.astype(jnp.float32) + eps)
    scale = gamma.astype(jnp.float32) * inv_std
    shift = beta.astype(jnp.float32) - running_mean.astype(jnp.float32) * scale
    w_folded = weight.astype(jnp.float32) * scale[:, None, None, None]
    conv = jax.lax.conv_general_dilated(
        x.astype(jnp.float32), w_folded,
        window_strides=(patch_size, patch_size), padding="VALID",
        dimension_numbers=("NCHW", "OIHW", "NCHW"))
    return conv + shift[None, :, None, None]


if __name__ == "__main__":
    def run_case(B, dim, H, W):
        patch_size = 2
        out_dim = 2 * dim
        key = jax.random.PRNGKey(0)
        kx, kw = jax.random.split(key)
        x = jax.random.normal(kx, (B, dim, H, W), dtype=jnp.float32)
        weight = jax.random.normal(
            kw, (out_dim, dim, patch_size, patch_size), dtype=jnp.float32) * 0.1

        # Deterministic BatchNorm2d(2*dim) parameters (inference/eval semantics).
        gamma = jnp.linspace(0.5, 1.5, out_dim, dtype=jnp.float32)
        beta = jnp.linspace(-0.2, 0.2, out_dim, dtype=jnp.float32)
        running_mean = jnp.linspace(-0.1, 0.1, out_dim, dtype=jnp.float32)
        running_var = jnp.linspace(0.8, 1.2, out_dim, dtype=jnp.float32)

        out = patch_merging_forward(x, weight, gamma, beta, running_mean, running_var,
                                    patch_size=patch_size)
        out = jax.block_until_ready(out)

        ref = reference_forward(x, weight, gamma, beta, running_mean, running_var,
                                patch_size=patch_size)
        assert out.shape == (B, out_dim, H // patch_size, W // patch_size)
        err = float(jnp.max(jnp.abs(out - ref)))
        assert jnp.allclose(out, ref, atol=1e-3, rtol=1e-3), f"max abs err = {err}"

    # Small shape from the module spec: single-tile grid, N padded 8 -> 128.
    run_case(B=2, dim=4, H=16, W=16)
    # Larger spatial size: exercises multi-tile M grid (3 x 512-row tiles) + M-row padding.
    run_case(B=2, dim=4, H=48, W=48)
    print("KERNEL_OK")
</pallas_src>

<mosaic_0001>
module attributes {stable_mosaic.version = 11 : i64} {
  func.func @_conv_bn_kernel(%arg0: i32, %arg1: i32, %arg2: memref<128x16xf32, #tpu.memory_space<vmem>>, %arg3: memref<16x128xf32, #tpu.memory_space<vmem>>, %arg4: memref<1x128xf32, #tpu.memory_space<vmem>>, %arg5: memref<128x128xf32, #tpu.memory_space<vmem>>) attributes {dimension_semantics = [#tpu.dimension_semantics<parallel>, #tpu.dimension_semantics<parallel>], iteration_bounds = array<i64: 1, 1>, scalar_prefetch = 0 : i64, scratch_operands = 0 : i64, tpu.core_type = #tpu.core_type<tc>, window_params = [{transform_indices = @transform_0, window_bounds = array<i64: 128, 16>}, {transform_indices = @transform_1, window_bounds = array<i64: 16, 128>}, {transform_indices = @transform_2, window_bounds = array<i64: 1, 128>}, {transform_indices = @transform_3, window_bounds = array<i64: 128, 128>}]} {
    %c0 = arith.constant 0 : index
    %c0_0 = arith.constant 0 : index
    %0 = vector.load %arg2[%c0, %c0_0] : memref<128x16xf32, #tpu.memory_space<vmem>>, vector<128x16xf32>
    %c0_1 = arith.constant 0 : index
    %c0_2 = arith.constant 0 : index
    %1 = vector.load %arg3[%c0_1, %c0_2] : memref<16x128xf32, #tpu.memory_space<vmem>>, vector<16x128xf32>
    %cst = arith.constant dense<0.000000e+00> : vector<128x128xf32>
    %2 = tpu.matmul %0, %1, %cst {dimension_numbers = #tpu.dot_dimension_numbers<[1], [0], [0], [1], [0, 0, 1, 1], [], []>} : vector<128x16xf32>, vector<16x128xf32>, vector<128x128xf32> -> vector<128x128xf32>
    %c0_3 = arith.constant 0 : index
    %c0_4 = arith.constant 0 : index
    %3 = vector.load %arg4[%c0_3, %c0_4] : memref<1x128xf32, #tpu.memory_space<vmem>>, vector<1x128xf32>
    %4 = vector.broadcast %3 : vector<1x128xf32> to vector<128x128xf32>
    %5 = arith.addf %2, %4 : vector<128x128xf32>
    %c0_5 = arith.constant 0 : index
    %c0_6 = arith.constant 0 : index
    %6 = vector.load %arg5[%c0_5, %c0_6] : memref<128x128xf32, #tpu.memory_space<vmem>>, vector<128x128xf32>
    tpu.vector_store %arg5[%c0_5, %c0_6], %5 {strides = array<i32>} : memref<128x128xf32, #tpu.memory_space<vmem>>, vector<128x128xf32>,
    return
  }
  func.func @transform_0(%arg0: i32, %arg1: i32) -> (i32, i32) {
    %c0_i32 = arith.constant 0 : i32
    %c0_i32_0 = arith.constant 0 : i32
    return %arg0, %c0_i32 : i32, i32
  }
  func.func @transform_1(%arg0: i32, %arg1: i32) -> (i32, i32) {
    %c0_i32 = arith.constant 0 : i32
    %c0_i32_0 = arith.constant 0 : i32
    return %c0_i32, %arg1 : i32, i32
  }
  func.func @transform_2(%arg0: i32, %arg1: i32) -> (i32, i32) {
    %c0_i32 = arith.constant 0 : i32
    %c0_i32_0 = arith.constant 0 : i32
    return %c0_i32, %arg1 : i32, i32
  }
  func.func @transform_3(%arg0: i32, %arg1: i32) -> (i32, i32) {
    %c0_i32 = arith.constant 0 : i32
    return %arg0, %arg1 : i32, i32
  }
}

</mosaic_0001>

<llo_original>
// kernel: tpu_custom_call.1
$region0: #{tpu_custom_call.1}
  #allocation0 [shape = 'u32[]', space=smem, size = 0x4, offset = 0x4, fixed_abs, tag = 'smem constant byte address 0x4 - core index']
  #allocation1 [shape = 'u32[144,128]{1,0:T(1,128)}', space=vmem, size = 0x12000, scoped, tag = 'internal scratch']
  %s0 = inlined_call_operand.vmem [shape: f32[128,16], index: 0, kind: input, shape index: {}]
  %s1 = inlined_call_operand.vmem [shape: f32[16,128], index: 1, kind: input, shape index: {}]
  %s2 = inlined_call_operand.vmem [shape: f32[1,128], index: 2, kind: input, shape index: {}]
  %s3 = inlined_call_operand.hbm [shape: f32[128,128], index: 3, kind: output, shape index: {}]
  %s4 = sld [smem:[#allocation0]]
  $region22: #{tpu_custom_call.1} parent=0
    _
  %s6 = ssub.s32 1, %s4
  %s7 = scalar_select 0, %s6, %s4
  $region1: #{tpu_custom_call.1} parent=0
    #allocation2 [shape = 'u8[65536]{0}', space=vmem, size = 0x10000, scoped, tag = 'output window, operand 0, single buffered']
    #allocation3 [shape = 's32[1]{0}', space=sflag, size = 0x4, scoped, tag = 'scoped memory for tpu_custom_call.1']
    %8 = vsyncpa [#allocation3], 0
    // Predicated region
    $region2: #{tpu_custom_call.1} parent=1 // pred_check
      _
    $region3: #{tpu_custom_call.1} parent=1 // pred_check_branch
      %10 = sbr.rel (0) target = $region5
    $region4: #{tpu_custom_call.1} parent=1 // pred_region
      _
    $region5: #{tpu_custom_call.1} parent=1 // pred_fallthru
      _
    // Predicated region
    $region6: #{tpu_custom_call.1} parent=1 // pred_check
      _
    $region7: #{tpu_custom_call.1} parent=1 // pred_check_branch
      %12 = sbr.rel (0) target = $region9
    $region8: #{tpu_custom_call.1} parent=1 // pred_region
      _
    $region9: #{tpu_custom_call.1} parent=1 // pred_fallthru
      _
    // Predicated region
    $region10: #{tpu_custom_call.1} parent=1 // pred_check
      _
    $region11: #{tpu_custom_call.1} parent=1 // pred_check_branch
      %14 = sbr.rel (0) target = $region13
    $region12: #{tpu_custom_call.1} parent=1 // pred_region
      _
    $region13: #{tpu_custom_call.1} parent=1 // pred_fallthru
      _
    %v15 = vld [vmem:[%s0] sm:$0xff]
    %v16 = vld [vmem:[%s0 + $0x8] sm:$0xff]
    %v17 = vld [vmem:[%s0 + $0x10] sm:$0xff]
    %v18 = vld [vmem:[%s0 + $0x18] sm:$0xff]
    %v19 = vld [vmem:[%s0 + $0x20] sm:$0xff]
    %v20 = vld [vmem:[%s0 + $0x28] sm:$0xff]
    %v21 = vld [vmem:[%s0 + $0x30] sm:$0xff]
    %v22 = vld [vmem:[%s0 + $0x38] sm:$0xff]
    %v23 = vld [vmem:[%s0 + $0x40] sm:$0xff]
    %v24 = vld [vmem:[%s0 + $0x48] sm:$0xff]
    %v25 = vld [vmem:[%s0 + $0x50] sm:$0xff]
    %v26 = vld [vmem:[%s0 + $0x58] sm:$0xff]
    %v27 = vld [vmem:[%s0 + $0x60] sm:$0xff]
    %v28 = vld [vmem:[%s0 + $0x68] sm:$0xff]
    %v29 = vld [vmem:[%s0 + $0x70] sm:$0xff]
    %v30 = vld [vmem:[%s0 + $0x78] sm:$0xff]
    %v31 = vld [vmem:[%s1] sm:$0xff]
    %v32 = vld [vmem:[%s1 + $0x8] sm:$0xff]
    %v33 = vld [vmem:[%s2] sm:$0x1]
    %v35 = vlaneseq
    %v36 = vshrl.u32 %v35, 7
    %v37 = vsub.s32 0, %v36
    %v38 = vrot.slane %v33, %v37
    %vm40 = vcmask 130048
    %v42 = vsel %vm40, %v15, 0
    %v45 = vsel %vm40, %v16, 0
    %v48 = vsel %vm40, %v17, 0
    %v51 = vsel %vm40, %v18, 0
    %v54 = vsel %vm40, %v19, 0
    %v57 = vsel %vm40, %v20, 0
    %v60 = vsel %vm40, %v21, 0
    %v63 = vsel %vm40, %v22, 0
    %v66 = vsel %vm40, %v23, 0
    %v69 = vsel %vm40, %v24, 0
    %v72 = vsel %vm40, %v25, 0
    %v75 = vsel %vm40, %v26, 0
    %v78 = vsel %vm40, %v27, 0
    %v81 = vsel %vm40, %v28, 0
    %v84 = vsel %vm40, %v29, 0
    %v87 = vsel %vm40, %v30, 0
    %89 = vmatprep.subr.mxu0 0.0
    %90 = vmatpush1.msra.mxu0 0.0
    %91 = vmatprep.subr.mxu0 0.0
    %92 = vmatpush1.msra.mxu0 0.0
    %93 = vmatprep.subr.mxu0 0.0
    %94 = vmatpush1.msra.mxu0 0.0
    %95 = vmatprep.subr.mxu0 0.0
    %96 = vmatpush1.msra.mxu0 0.0
    %97 = vmatprep.subr.mxu0 0.0
    %98 = vmatpush1.msra.mxu0 0.0
    %99 = vmatprep.subr.mxu0 0.0
    %100 = vmatpush1.msra.mxu0 0.0
    %101 = vmatprep.subr.mxu0 0.0
    %102 = vmatpush1.msra.mxu0 0.0
    %103 = vmatprep.subr.mxu0 0.0
    %104 = vmatpush1.msra.mxu0 0.0
    %105 = vmatprep.subr.mxu0 0.0
    %106 = vmatpush1.msra.mxu0 0.0
    %107 = vmatprep.subr.mxu0 0.0
    %108 = vmatpush1.msra.mxu0 0.0
    %109 = vmatprep.subr.mxu0 0.0
    %110 = vmatpush1.msra.mxu0 0.0
    %111 = vmatprep.subr.mxu0 0.0
    %112 = vmatpush1.msra.mxu0 0.0
    %113 = vmatprep.subr.mxu0 0.0
    %114 = vmatpush1.msra.mxu0 0.0
    %115 = vmatprep.subr.mxu0 0.0
    %116 = vmatpush1.msra.mxu0 0.0
    %117 = vmatprep.subr.mxu0 0.0
    %118 = vmatpush1.msra.mxu0 %v32
    %119 = vmatprep.subr.mxu0 0.0
    %120 = vmatpush1.msra.mxu0 %v31
    %121 = vmatprep.subr.mxu0 0.0
    %122 = vmatpush2.msra.mxu0 0.0
    %123 = vmatprep.subr.mxu0 0.0
    %124 = vmatpush2.msra.mxu0 0.0
    %125 = vmatprep.subr.mxu0 0.0
    %126 = vmatpush2.msra.mxu0 0.0
    %127 = vmatprep.subr.mxu0 0.0
    %128 = vmatpush2.msra.mxu0 0.0
    %129 = vmatprep.subr.mxu0 0.0
    %130 = vmatpush2.msra.mxu0 0.0
    %131 = vmatprep.subr.mxu0 0.0
    %132 = vmatpush2.msra.mxu0 0.0
    %133 = vmatprep.subr.mxu0 0.0
    %134 = vmatpush2.msra.mxu0 0.0
    %135 = vmatprep.subr.mxu0 0.0
    %136 = vmatpush2.msra.mxu0 0.0
    %137 = vmatprep.subr.mxu0 0.0
    %138 = vmatpush2.msra.mxu0 0.0
    %139 = vmatprep.subr.mxu0 0.0
    %140 = vmatpush2.msra.mxu0 0.0
    %141 = vmatprep.subr.mxu0 0.0
    %142 = vmatpush2.msra.mxu0 0.0
    %143 = vmatprep.subr.mxu0 0.0
    %144 = vmatpush2.msra.mxu0 0.0
    %145 = vmatprep.subr.mxu0 0.0
    %146 = vmatpush2.msra.mxu0 0.0
    %147 = vmatprep.subr.mxu0 0.0
    %148 = vmatpush2.msra.mxu0 0.0
    %149 = vmatprep.subr.mxu0 0.0
    %150 = vmatpush2.msra.mxu0 0.0
    %151 = vmatprep.subr.mxu0 0.0
    %152 = vmatpush2.msra.mxu0 0.0
    %153 = vmatprep.mubr.f32.mxu0 0.0
    %154 = vmatmul.mubr.f32.gmra.mxu0 %v42
    %v155 = vpop.f32.mrf.mxu0
    %v156 = vadd.f32 %v38, %v155
    %v157 = vpop.f32.mrf.mxu0
    %158 = vmatprep.mubr.f32.mxu0 0.0
    %159 = vmatmul.mubr.f32.gmra.mxu0 %v45
    %v160 = vpop.f32.mrf.mxu0
    %v161 = vadd.f32 %v38, %v160
    %v162 = vpop.f32.mrf.mxu0
    %163 = vmatprep.mubr.f32.mxu0 0.0
    %164 = vmatmul.mubr.f32.gmra.mxu0 %v48
    %v165 = vpop.f32.mrf.mxu0
    %v166 = vadd.f32 %v38, %v165
    %v167 = vpop.f32.mrf.mxu0
    %168 = vmatprep.mubr.f32.mxu0 0.0
    %169 = vmatmul.mubr.f32.gmra.mxu0 %v51
    %v170 = vpop.f32.mrf.mxu0
    %v171 = vadd.f32 %v38, %v170
    %v172 = vpop.f32.mrf.mxu0
    %173 = vmatprep.mubr.f32.mxu0 0.0
    %174 = vmatmul.mubr.f32.gmra.mxu0 %v54
    %v175 = vpop.f32.mrf.mxu0
    %v176 = vadd.f32 %v38, %v175
    %v177 = vpop.f32.mrf.mxu0
    %178 = vmatprep.mubr.f32.mxu0 0.0
    %179 = vmatmul.mubr.f32.gmra.mxu0 %v57
    %v180 = vpop.f32.mrf.mxu0
    %v181 = vadd.f32 %v38, %v180
    %v182 = vpop.f32.mrf.mxu0
    %183 = vmatprep.mubr.f32.mxu0 0.0
    %184 = vmatmul.mubr.f32.gmra.mxu0 %v60
    %v185 = vpop.f32.mrf.mxu0
    %v186 = vadd.f32 %v38, %v185
    %v187 = vpop.f32.mrf.mxu0
    %188 = vmatprep.mubr.f32.mxu0 0.0
    %189 = vmatmul.mubr.f32.gmra.mxu0 %v63
    %v190 = vpop.f32.mrf.mxu0
    %v191 = vadd.f32 %v38, %v190
    %v192 = vpop.f32.mrf.mxu0
    %193 = vmatprep.mubr.f32.mxu0 0.0
    %194 = vmatmul.mubr.f32.gmra.mxu0 %v66
    %v195 = vpop.f32.mrf.mxu0
    %v196 = vadd.f32 %v38, %v195
    %v197 = vpop.f32.mrf.mxu0
    %198 = vmatprep.mubr.f32.mxu0 0.0
    %199 = vmatmul.mubr.f32.gmra.mxu0 %v69
    %v200 = vpop.f32.mrf.mxu0
    %v201 = vadd.f32 %v38, %v200
    %v202 = vpop.f32.mrf.mxu0
    %203 = vmatprep.mubr.f32.mxu0 0.0
    %204 = vmatmul.mubr.f32.gmra.mxu0 %v72
    %v205 = vpop.f32.mrf.mxu0
    %v206 = vadd.f32 %v38, %v205
    %v207 = vpop.f32.mrf.mxu0
    %208 = vmatprep.mubr.f32.mxu0 0.0
    %209 = vmatmul.mubr.f32.gmra.mxu0 %v75
    %v210 = vpop.f32.mrf.mxu0
    %v211 = vadd.f32 %v38, %v210
    %v212 = vpop.f32.mrf.mxu0
    %213 = vmatprep.mubr.f32.mxu0 0.0
    %214 = vmatmul.mubr.f32.gmra.mxu0 %v78
    %v215 = vpop.f32.mrf.mxu0
    %v216 = vadd.f32 %v38, %v215
    %v217 = vpop.f32.mrf.mxu0
    %218 = vmatprep.mubr.f32.mxu0 0.0
    %219 = vmatmul.mubr.f32.gmra.mxu0 %v81
    %v220 = vpop.f32.mrf.mxu0
    %v221 = vadd.f32 %v38, %v220
    %v222 = vpop.f32.mrf.mxu0
    %223 = vmatprep.mubr.f32.mxu0 0.0
    %224 = vmatmul.mubr.f32.gmra.mxu0 %v84
    %v225 = vpop.f32.mrf.mxu0
    %v226 = vadd.f32 %v38, %v225
    %v227 = vpop.f32.mrf.mxu0
    %228 = vmatprep.mubr.f32.mxu0 0.0
    %229 = vmatmul.mubr.f32.gmra.mxu0 %v87
    %v230 = vpop.f32.mrf.mxu0
    %v231 = vadd.f32 %v38, %v230
    %v232 = vpop.f32.mrf.mxu0
    %233 = vdwg.mxu0
    %234 = vst [vmem:[#allocation2] sm:$0xff] %v156
    %235 = vst [vmem:[#allocation2 + $0x8] sm:$0xff] %v161
    %236 = vst [vmem:[#allocation2 + $0x10] sm:$0xff] %v166
    %237 = vst [vmem:[#allocation2 + $0x18] sm:$0xff] %v171
    %238 = vst [vmem:[#allocation2 + $0x20] sm:$0xff] %v176
    %239 = vst [vmem:[#allocation2 + $0x28] sm:$0xff] %v181
    %240 = vst [vmem:[#allocation2 + $0x30] sm:$0xff] %v186
    %241 = vst [vmem:[#allocation2 + $0x38] sm:$0xff] %v191
    %242 = vst [vmem:[#allocation2 + $0x40] sm:$0xff] %v196
    %243 = vst [vmem:[#allocation2 + $0x48] sm:$0xff] %v201
    %244 = vst [vmem:[#allocation2 + $0x50] sm:$0xff] %v206
    %245 = vst [vmem:[#allocation2 + $0x58] sm:$0xff] %v211
    %246 = vst [vmem:[#allocation2 + $0x60] sm:$0xff] %v216
    %247 = vst [vmem:[#allocation2 + $0x68] sm:$0xff] %v221
    %248 = vst [vmem:[#allocation2 + $0x70] sm:$0xff] %v226
    %249 = vst [vmem:[#allocation2 + $0x78] sm:$0xff] %v231
    // Predicated region
    $region14: #{tpu_custom_call.1} parent=1 // pred_check
      _
    $region15: #{tpu_custom_call.1} parent=1 // pred_check_branch
      %251 = sbr.rel (0) target = $region17
    $region16: #{tpu_custom_call.1} parent=1 // pred_region
      %s253 = ssub.s32 2048, 2048
      %254 = vsyncadd [#allocation3], %s253
      %s255 = sshll.u32 [#allocation2], 4
      %s256 = int_to_ptr.vmem [resolvable:$true] %s255
      %261 = dma.vmem_to_hbm [thread:$0]  %s256, 2048, %s3, [#allocation3], 128, 128, 8
    $region17: #{tpu_custom_call.1} parent=1 // pred_fallthru
      _
    // Predicated region
    $region18: #{tpu_custom_call.1} parent=1 // pred_check
      _
    $region19: #{tpu_custom_call.1} parent=1 // pred_check_branch
      %263 = sbr.rel (0) target = $region21
    $region20: #{tpu_custom_call.1} parent=1 // pred_region
      %264 = dma.done [#allocation3], 2048
    $region21: #{tpu_custom_call.1} parent=1 // pred_fallthru
      _
    %265 = vsyncpa [#allocation3], 1

</llo_original>
